<compile_context>
chip_gen: v7x
topology: tpu7x:2x2x1
jax: 0.10.0
libtpu: 0.0.40
codegen_flags: <defaults>
</compile_context>

<pallas_src>
import math

import jax
import jax.numpy as jnp
from jax.experimental import pallas as pl
from jax.experimental.pallas import tpu as pltpu

LN_EPS = 1e-5
CLAMP_EPS = 1e-6
LOG_2PI = math.log(2.0 * math.pi)


def _round_up(x, m):
    return ((x + m - 1) // m) * m


def _layer_dims(feature_dim, action_dim, hidden_dims):
    dims, d = [], feature_dim
    for h in hidden_dims:
        dims.append((d, h))
        d = h
    dims.append((d, action_dim))
    return dims


def _pick_block_b(batch, target=1024):
    """Largest 128-multiple divisor of batch <= target, preferring >=2 grid steps
    (v7x megacore). Falls back to the full batch when batch is not 128-divisible
    (the lane block must then equal the full array extent)."""
    if batch % 128 != 0:
        return batch
    best = None
    bb = 128
    limit = min(batch // 2, target)
    while bb <= limit:
        if batch % bb == 0:
            best = bb
        bb += 128
    return best if best is not None else batch


def _make_actor_kernel(layer_dims, action_dim, max_action, std_value,
                       external_action, out_rows):
    """Kernel closed over static layer sizes / head constants.

    Layout: everything is transposed — batch on the 128-lane axis, feature/hidden
    on sublanes. LayerNorm reduces over the sublane (hidden) axis.
    """
    inv_std = 1.0 / std_value
    log_std = math.log(std_value)
    lo = -max_action + CLAMP_EPS
    hi = max_action - CLAMP_EPS
    num_hidden = len(layer_dims) - 1
    pad_rows = out_rows - (2 * action_dim + 1)

    def kernel(x_ref, na_ref, w_ref, vec_ref, out_ref):
        # h: (hidden, block_b) — batch on lanes.
        h = x_ref[...].astype(jnp.float32)

        # ---- MLP trunk: Linear -> LayerNorm -> SiLU per hidden layer ----
        for l in range(num_hidden):
            din, dout = layer_dims[l]
            w = w_ref[l, 0:dout, 0:din]                      # W^T, (dout, din)
            b = vec_ref[0:dout, 3 * l + 0:3 * l + 1]         # (dout, 1)
            gamma = vec_ref[0:dout, 3 * l + 1:3 * l + 2]
            beta = vec_ref[0:dout, 3 * l + 2:3 * l + 3]

            h = jnp.dot(w, h, preferred_element_type=jnp.float32) + b
            # two-pass LayerNorm statistics over the hidden (sublane) axis
            mean = jnp.mean(h, axis=0, keepdims=True)
            hc = h - mean
            var = jnp.mean(hc * hc, axis=0, keepdims=True)
            h = hc * jax.lax.rsqrt(var + LN_EPS)
            h = h * gamma + beta
            h = h * jax.nn.sigmoid(h)                        # SiLU

        # ---- deterministic head: mu = max_action * tanh(W x + b) ----
        din, dout = layer_dims[num_hidden]
        wh = w_ref[num_hidden, 0:dout, 0:din]
        bh = vec_ref[0:dout, 3 * num_hidden:3 * num_hidden + 1]
        mu = max_action * jnp.tanh(
            jnp.dot(wh, h, preferred_element_type=jnp.float32) + bh)  # (A, block_b)

        na = na_ref[...].astype(jnp.float32)
        if external_action:
            action = na
        else:
            # TruncatedNormal.rsample (clipped-normal form), noise supplied from outside
            action = jnp.clip(mu + std_value * na, lo, hi)

        # Normal log-prob of the action, summed over the action dim (sublane axis)
        z = (action - mu) * inv_std
        logp = jnp.sum(-0.5 * z * z - log_std - 0.5 * LOG_2PI,
                       axis=0, keepdims=True)                # (1, block_b)

        # lane-dense output slab [mu | action | logp | zero pad]; single unmasked store
        pieces = [mu, action, logp]
        if pad_rows:
            pieces.append(jnp.zeros((pad_rows, mu.shape[1]), jnp.float32))
        out_ref[...] = jnp.concatenate(pieces, axis=0)

    return kernel


def init_actor_params(key, feature_dim, action_dim, hidden_dims):
    """All weights packed (transposed) into one (L+1, R, C) array; all 1-D params
    packed into one (R, 3L+1) array (columns: [b, gamma, beta]*L, head bias)."""
    layer_dims = _layer_dims(feature_dim, action_dim, hidden_dims)
    n_layers = len(layer_dims)
    num_hidden = len(hidden_dims)
    r_pad = _round_up(max(o for _, o in layer_dims), 8)
    c_pad = max(i for i, _ in layer_dims)
    n_cols = 3 * num_hidden + 1

    w_packed = jnp.zeros((n_layers, r_pad, c_pad), jnp.float32)
    vecs = jnp.zeros((r_pad, n_cols), jnp.float32)

    for l, (din, dout) in enumerate(layer_dims):
        key, kw, kb = jax.random.split(key, 3)
        W = jax.random.normal(kw, (din, dout), jnp.float32) / math.sqrt(din)
        b = 0.05 * jax.random.normal(kb, (dout,), jnp.float32)
        w_packed = w_packed.at[l, :dout, :din].set(W.T)
        if l < num_hidden:
            key, kg, kbt = jax.random.split(key, 3)
            gamma = 1.0 + 0.05 * jax.random.normal(kg, (dout,), jnp.float32)
            beta = 0.05 * jax.random.normal(kbt, (dout,), jnp.float32)
            vecs = vecs.at[:dout, 3 * l + 0].set(b)
            vecs = vecs.at[:dout, 3 * l + 1].set(gamma)
            vecs = vecs.at[:dout, 3 * l + 2].set(beta)
        else:
            vecs = vecs.at[:dout, 3 * num_hidden].set(b)
    return w_packed, vecs


def actor_fix_net_forward(x, noise_or_action, w_packed, vecs, *, hidden_dims,
                          action_dim, max_action=1.0, std_value=1.0,
                          external_action=False, block_b=None):
    """Returns ((mean, std), action, log_prob); (mean, std) parameterize `pi`."""
    batch, feature_dim = x.shape
    layer_dims = _layer_dims(feature_dim, action_dim, hidden_dims)
    if block_b is None:
        block_b = _pick_block_b(batch)
    assert batch % block_b == 0, "batch must be divisible by the batch block"
    assert block_b == batch or block_b % 128 == 0, \
        "lane-tiled batch block must be 128-aligned or equal the full batch"

    out_rows = _round_up(2 * action_dim + 1, 8)
    kernel = _make_actor_kernel(layer_dims, action_dim, float(max_action),
                                float(std_value), external_action, out_rows)

    # layout plumbing: batch onto the 128-lane axis
    xT = jnp.transpose(x)                     # (feature_dim, batch)
    naT = jnp.transpose(noise_or_action)      # (action_dim, batch)

    slab = pl.pallas_call(
        kernel,
        out_shape=jax.ShapeDtypeStruct((out_rows, batch), jnp.float32),
        grid=(batch // block_b,),
        in_specs=[
            pl.BlockSpec((feature_dim, block_b), lambda i: (0, i)),   # x^T (batch-tiled)
            pl.BlockSpec((action_dim, block_b), lambda i: (0, i)),    # noise / action ^T
            pl.BlockSpec(w_packed.shape, lambda i: (0, 0, 0)),        # resident weights
            pl.BlockSpec(vecs.shape, lambda i: (0, 0)),               # resident 1-D params
        ],
        out_specs=pl.BlockSpec((out_rows, block_b), lambda i: (0, i)),
        compiler_params=pltpu.CompilerParams(
            dimension_semantics=("parallel",)),
    )(xT, naT, w_packed, vecs)

    mean = jnp.transpose(slab[0:action_dim, :])
    action = jnp.transpose(slab[action_dim:2 * action_dim, :])
    log_prob = slab[2 * action_dim, :]
    std = jnp.full_like(mean, std_value)
    return (mean, std), action, log_prob


def actor_fix_net_reference(x, noise_or_action, w_packed, vecs, *, hidden_dims,
                            action_dim, max_action, std_value, external_action):
    """Pure-JAX reference for correctness checking (batch-major)."""
    feature_dim = x.shape[-1]
    layer_dims = _layer_dims(feature_dim, action_dim, hidden_dims)
    L = len(hidden_dims)
    hi_prec = jax.lax.Precision.HIGHEST
    h = x
    for l, (din, dout) in enumerate(layer_dims[:-1]):
        W = w_packed[l, :dout, :din].T
        b = vecs[:dout, 3 * l + 0]
        gamma = vecs[:dout, 3 * l + 1]
        beta = vecs[:dout, 3 * l + 2]
        h = jnp.dot(h, W, precision=hi_prec) + b
        mean = jnp.mean(h, -1, keepdims=True)
        var = jnp.mean((h - mean) ** 2, -1, keepdims=True)
        h = (h - mean) / jnp.sqrt(var + LN_EPS)
        h = h * gamma + beta
        h = h * jax.nn.sigmoid(h)
    din, dout = layer_dims[-1]
    mu = max_action * jnp.tanh(
        jnp.dot(h, w_packed[L, :dout, :din].T, precision=hi_prec) + vecs[:dout, 3 * L])
    if external_action:
        a = noise_or_action
    else:
        a = jnp.clip(mu + std_value * noise_or_action,
                     -max_action + CLAMP_EPS, max_action - CLAMP_EPS)
    z = (a - mu) / std_value
    logp = jnp.sum(-0.5 * z * z - math.log(std_value) - 0.5 * LOG_2PI, axis=-1)
    return mu, a, logp


if __name__ == "__main__":
    feature_dim = 32
    action_dim = 4
    hidden_dims = [32, 32]
    max_action = 1.0
    std_value = 1.0

    key = jax.random.PRNGKey(0)
    kp, kx1, kn1, kx2, kn2 = jax.random.split(key, 5)
    w_packed, vecs = init_actor_params(kp, feature_dim, action_dim, hidden_dims)

    for batch, kx, kn in ((8, kx1, kn1), (512, kx2, kn2)):
        x = jax.random.normal(kx, (batch, feature_dim), jnp.float32)
        noise = jax.random.normal(kn, (batch, action_dim), jnp.float32)

        # sampling path (action=None in the torch module)
        (mean, std), action, log_prob = actor_fix_net_forward(
            x, noise, w_packed, vecs, hidden_dims=hidden_dims, action_dim=action_dim,
            max_action=max_action, std_value=std_value)
        jax.block_until_ready((mean, std, action, log_prob))

        # external-action path (action given to forward)
        (_, _), action2, log_prob2 = actor_fix_net_forward(
            x, action, w_packed, vecs, hidden_dims=hidden_dims, action_dim=action_dim,
            max_action=max_action, std_value=std_value, external_action=True)
        jax.block_until_ready((action2, log_prob2))

        # reference check
        mu_r, a_r, lp_r = actor_fix_net_reference(
            x, noise, w_packed, vecs, hidden_dims=hidden_dims, action_dim=action_dim,
            max_action=max_action, std_value=std_value, external_action=False)
        assert bool(jnp.allclose(mean, mu_r, atol=1e-3, rtol=1e-3))
        assert bool(jnp.allclose(action, a_r, atol=1e-3, rtol=1e-3))
        assert bool(jnp.allclose(log_prob, lp_r, atol=1e-3, rtol=1e-3))
        assert bool(jnp.allclose(action2, action, atol=1e-5))
        assert bool(jnp.allclose(log_prob2, log_prob, atol=1e-4, rtol=1e-4))

        assert mean.shape == (batch, action_dim)
        assert std.shape == (batch, action_dim)
        assert action.shape == (batch, action_dim)
        assert log_prob.shape == (batch,)
        assert bool(jnp.all(jnp.isfinite(mean)))
        assert bool(jnp.all(std == std_value))
        assert bool(jnp.all(jnp.abs(action) <= max_action))
        assert bool(jnp.all(jnp.isfinite(log_prob)))

    print("KERNEL_OK")
</pallas_src>

<mosaic_0001>
module attributes {stable_mosaic.version = 11 : i64} {
  func.func @kernel(%arg0: i32, %arg1: memref<32x8xf32, #tpu.memory_space<vmem>>, %arg2: memref<4x8xf32, #tpu.memory_space<vmem>>, %arg3: memref<3x32x32xf32, #tpu.memory_space<vmem>>, %arg4: memref<32x7xf32, #tpu.memory_space<vmem>>, %arg5: memref<16x8xf32, #tpu.memory_space<vmem>>) attributes {dimension_semantics = [#tpu.dimension_semantics<parallel>], iteration_bounds = array<i64: 1>, scalar_prefetch = 0 : i64, scratch_operands = 0 : i64, tpu.core_type = #tpu.core_type<tc>, window_params = [{transform_indices = @transform_0, window_bounds = array<i64: 32, 8>}, {transform_indices = @transform_1, window_bounds = array<i64: 4, 8>}, {pipeline_mode = #tpu.pipeline_mode<synchronous>, transform_indices = @transform_2, window_bounds = array<i64: 3, 32, 32>}, {pipeline_mode = #tpu.pipeline_mode<synchronous>, transform_indices = @transform_3, window_bounds = array<i64: 32, 7>}, {transform_indices = @transform_4, window_bounds = array<i64: 16, 8>}]} {
    %c0 = arith.constant 0 : index
    %c0_0 = arith.constant 0 : index
    %0 = vector.load %arg1[%c0, %c0_0] : memref<32x8xf32, #tpu.memory_space<vmem>>, vector<32x8xf32>
    %c0_1 = arith.constant 0 : index
    %c0_2 = arith.constant 0 : index
    %c0_3 = arith.constant 0 : index
    %1 = vector.load %arg3[%c0_1, %c0_2, %c0_3] : memref<3x32x32xf32, #tpu.memory_space<vmem>>, vector<1x32x32xf32>
    %2 = vector.shape_cast %1 : vector<1x32x32xf32> to vector<32x32xf32>
    %c0_4 = arith.constant 0 : index
    %c0_5 = arith.constant 0 : index
    %3 = vector.load %arg4[%c0_4, %c0_5] : memref<32x7xf32, #tpu.memory_space<vmem>>, vector<32x1xf32>
    %c0_6 = arith.constant 0 : index
    %c1 = arith.constant 1 : index
    %4 = vector.load %arg4[%c0_6, %c1] : memref<32x7xf32, #tpu.memory_space<vmem>>, vector<32x1xf32>
    %c0_7 = arith.constant 0 : index
    %c2 = arith.constant 2 : index
    %5 = vector.load %arg4[%c0_7, %c2] : memref<32x7xf32, #tpu.memory_space<vmem>>, vector<32x1xf32>
    %cst = arith.constant dense<0.000000e+00> : vector<32x8xf32>
    %6 = tpu.matmul %2, %0, %cst {dimension_numbers = #tpu.dot_dimension_numbers<[1], [0], [0], [1], [0, 0, 1, 1], [], []>} : vector<32x32xf32>, vector<32x8xf32>, vector<32x8xf32> -> vector<32x8xf32>
    %7 = vector.broadcast %3 : vector<32x1xf32> to vector<32x8xf32>
    %8 = arith.addf %6, %7 : vector<32x8xf32>
    %cst_8 = arith.constant dense<0.000000e+00> : vector<8xf32>
    %9 = vector.multi_reduction <add>, %8, %cst_8 [0] : vector<32x8xf32> to vector<8xf32>
    %10 = vector.shape_cast %9 : vector<8xf32> to vector<1x8xf32>
    %cst_9 = arith.constant 3.200000e+01 : f32
    %11 = vector.broadcast %cst_9 : f32 to vector<1x8xf32>
    %12 = arith.divf %10, %11 : vector<1x8xf32>
    %13 = vector.broadcast %12 : vector<1x8xf32> to vector<32x8xf32>
    %14 = arith.subf %8, %13 : vector<32x8xf32>
    %15 = arith.mulf %14, %14 : vector<32x8xf32>
    %cst_10 = arith.constant dense<0.000000e+00> : vector<8xf32>
    %16 = vector.multi_reduction <add>, %15, %cst_10 [0] : vector<32x8xf32> to vector<8xf32>
    %17 = vector.shape_cast %16 : vector<8xf32> to vector<1x8xf32>
    %cst_11 = arith.constant 3.200000e+01 : f32
    %18 = vector.broadcast %cst_11 : f32 to vector<1x8xf32>
    %19 = arith.divf %17, %18 : vector<1x8xf32>
    %cst_12 = arith.constant 9.99999974E-6 : f32
    %20 = vector.broadcast %cst_12 : f32 to vector<1x8xf32>
    %21 = arith.addf %19, %20 : vector<1x8xf32>
    %22 = math.rsqrt %21 : vector<1x8xf32>
    %23 = vector.broadcast %22 : vector<1x8xf32> to vector<32x8xf32>
    %24 = arith.mulf %14, %23 : vector<32x8xf32>
    %25 = vector.broadcast %4 : vector<32x1xf32> to vector<32x8xf32>
    %26 = arith.mulf %24, %25 : vector<32x8xf32>
    %27 = vector.broadcast %5 : vector<32x1xf32> to vector<32x8xf32>
    %28 = arith.addf %26, %27 : vector<32x8xf32>
    %29 = arith.negf %28 : vector<32x8xf32>
    %30 = math.exp %29 : vector<32x8xf32>
    %cst_13 = arith.constant 1.000000e+00 : f32
    %31 = vector.broadcast %cst_13 : f32 to vector<32x8xf32>
    %32 = arith.addf %31, %30 : vector<32x8xf32>
    %33 = arith.divf %31, %32 : vector<32x8xf32>
    %34 = arith.mulf %28, %33 : vector<32x8xf32>
    %c1_14 = arith.constant 1 : index
    %c0_15 = arith.constant 0 : index
    %c0_16 = arith.constant 0 : index
    %35 = vector.load %arg3[%c1_14, %c0_15, %c0_16] : memref<3x32x32xf32, #tpu.memory_space<vmem>>, vector<1x32x32xf32>
    %36 = vector.shape_cast %35 : vector<1x32x32xf32> to vector<32x32xf32>
    %c0_17 = arith.constant 0 : index
    %c3 = arith.constant 3 : index
    %37 = vector.load %arg4[%c0_17, %c3] : memref<32x7xf32, #tpu.memory_space<vmem>>, vector<32x1xf32>
    %c0_18 = arith.constant 0 : index
    %c4 = arith.constant 4 : index
    %38 = vector.load %arg4[%c0_18, %c4] : memref<32x7xf32, #tpu.memory_space<vmem>>, vector<32x1xf32>
    %c0_19 = arith.constant 0 : index
    %c5 = arith.constant 5 : index
    %39 = vector.load %arg4[%c0_19, %c5] : memref<32x7xf32, #tpu.memory_space<vmem>>, vector<32x1xf32>
    %cst_20 = arith.constant dense<0.000000e+00> : vector<32x8xf32>
    %40 = tpu.matmul %36, %34, %cst_20 {dimension_numbers = #tpu.dot_dimension_numbers<[1], [0], [0], [1], [0, 0, 1, 1], [], []>} : vector<32x32xf32>, vector<32x8xf32>, vector<32x8xf32> -> vector<32x8xf32>
    %41 = vector.broadcast %37 : vector<32x1xf32> to vector<32x8xf32>
    %42 = arith.addf %40, %41 : vector<32x8xf32>
    %cst_21 = arith.constant dense<0.000000e+00> : vector<8xf32>
    %43 = vector.multi_reduction <add>, %42, %cst_21 [0] : vector<32x8xf32> to vector<8xf32>
    %44 = vector.shape_cast %43 : vector<8xf32> to vector<1x8xf32>
    %cst_22 = arith.constant 3.200000e+01 : f32
    %45 = vector.broadcast %cst_22 : f32 to vector<1x8xf32>
    %46 = arith.divf %44, %45 : vector<1x8xf32>
    %47 = vector.broadcast %46 : vector<1x8xf32> to vector<32x8xf32>
    %48 = arith.subf %42, %47 : vector<32x8xf32>
    %49 = arith.mulf %48, %48 : vector<32x8xf32>
    %cst_23 = arith.constant dense<0.000000e+00> : vector<8xf32>
    %50 = vector.multi_reduction <add>, %49, %cst_23 [0] : vector<32x8xf32> to vector<8xf32>
    %51 = vector.shape_cast %50 : vector<8xf32> to vector<1x8xf32>
    %cst_24 = arith.constant 3.200000e+01 : f32
    %52 = vector.broadcast %cst_24 : f32 to vector<1x8xf32>
    %53 = arith.divf %51, %52 : vector<1x8xf32>
    %cst_25 = arith.constant 9.99999974E-6 : f32
    %54 = vector.broadcast %cst_25 : f32 to vector<1x8xf32>
    %55 = arith.addf %53, %54 : vector<1x8xf32>
    %56 = math.rsqrt %55 : vector<1x8xf32>
    %57 = vector.broadcast %56 : vector<1x8xf32> to vector<32x8xf32>
    %58 = arith.mulf %48, %57 : vector<32x8xf32>
    %59 = vector.broadcast %38 : vector<32x1xf32> to vector<32x8xf32>
    %60 = arith.mulf %58, %59 : vector<32x8xf32>
    %61 = vector.broadcast %39 : vector<32x1xf32> to vector<32x8xf32>
    %62 = arith.addf %60, %61 : vector<32x8xf32>
    %63 = arith.negf %62 : vector<32x8xf32>
    %64 = math.exp %63 : vector<32x8xf32>
    %cst_26 = arith.constant 1.000000e+00 : f32
    %65 = vector.broadcast %cst_26 : f32 to vector<32x8xf32>
    %66 = arith.addf %65, %64 : vector<32x8xf32>
    %67 = arith.divf %65, %66 : vector<32x8xf32>
    %68 = arith.mulf %62, %67 : vector<32x8xf32>
    %c2_27 = arith.constant 2 : index
    %c0_28 = arith.constant 0 : index
    %c0_29 = arith.constant 0 : index
    %69 = vector.load %arg3[%c2_27, %c0_28, %c0_29] : memref<3x32x32xf32, #tpu.memory_space<vmem>>, vector<1x4x32xf32>
    %70 = vector.shape_cast %69 : vector<1x4x32xf32> to vector<4x32xf32>
    %c0_30 = arith.constant 0 : index
    %c6 = arith.constant 6 : index
    %71 = vector.load %arg4[%c0_30, %c6] : memref<32x7xf32, #tpu.memory_space<vmem>>, vector<4x1xf32>
    %cst_31 = arith.constant dense<0.000000e+00> : vector<4x8xf32>
    %72 = tpu.matmul %70, %68, %cst_31 {dimension_numbers = #tpu.dot_dimension_numbers<[1], [0], [0], [1], [0, 0, 1, 1], [], []>} : vector<4x32xf32>, vector<32x8xf32>, vector<4x8xf32> -> vector<4x8xf32>
    %73 = vector.broadcast %71 : vector<4x1xf32> to vector<4x8xf32>
    %74 = arith.addf %72, %73 : vector<4x8xf32>
    %75 = math.tanh %74 : vector<4x8xf32>
    %cst_32 = arith.constant 1.000000e+00 : f32
    %76 = vector.broadcast %cst_32 : f32 to vector<4x8xf32>
    %77 = arith.mulf %76, %75 : vector<4x8xf32>
    %c0_33 = arith.constant 0 : index
    %c0_34 = arith.constant 0 : index
    %78 = vector.load %arg2[%c0_33, %c0_34] : memref<4x8xf32, #tpu.memory_space<vmem>>, vector<4x8xf32>
    %cst_35 = arith.constant 1.000000e+00 : f32
    %79 = vector.broadcast %cst_35 : f32 to vector<4x8xf32>
    %80 = arith.mulf %79, %78 : vector<4x8xf32>
    %81 = arith.addf %77, %80 : vector<4x8xf32>
    %cst_36 = arith.constant -0.999998986 : f32
    %cst_37 = arith.constant 0.999998986 : f32
    %82 = vector.broadcast %cst_36 : f32 to vector<4x8xf32>
    %83 = arith.maximumf %82, %81 : vector<4x8xf32>
    %84 = vector.broadcast %cst_37 : f32 to vector<4x8xf32>
    %85 = arith.minimumf %84, %83 : vector<4x8xf32>
    %86 = arith.subf %85, %77 : vector<4x8xf32>
    %cst_38 = arith.constant 1.000000e+00 : f32
    %87 = vector.broadcast %cst_38 : f32 to vector<4x8xf32>
    %88 = arith.mulf %86, %87 : vector<4x8xf32>
    %cst_39 = arith.constant -5.000000e-01 : f32
    %89 = vector.broadcast %cst_39 : f32 to vector<4x8xf32>
    %90 = arith.mulf %89, %88 : vector<4x8xf32>
    %91 = arith.mulf %90, %88 : vector<4x8xf32>
    %cst_40 = arith.constant 0.000000e+00 : f32
    %92 = vector.broadcast %cst_40 : f32 to vector<4x8xf32>
    %93 = arith.subf %91, %92 : vector<4x8xf32>
    %cst_41 = arith.constant 0.918938517 : f32
    %94 = vector.broadcast %cst_41 : f32 to vector<4x8xf32>
    %95 = arith.subf %93, %94 : vector<4x8xf32>
    %cst_42 = arith.constant dense<0.000000e+00> : vector<8xf32>
    %96 = vector.multi_reduction <add>, %95, %cst_42 [0] : vector<4x8xf32> to vector<8xf32>
    %97 = vector.shape_cast %96 : vector<8xf32> to vector<1x8xf32>
    %cst_43 = arith.constant 0.000000e+00 : f32
    %98 = vector.broadcast %cst_43 : f32 to vector<7x8xf32>
    %99 = tpu.concatenate %77, %85, %97, %98 in 0 : vector<4x8xf32>, vector<4x8xf32>, vector<1x8xf32>, vector<7x8xf32> -> vector<16x8xf32>
    %c0_44 = arith.constant 0 : index
    %c0_45 = arith.constant 0 : index
    %100 = vector.load %arg5[%c0_44, %c0_45] : memref<16x8xf32, #tpu.memory_space<vmem>>, vector<16x8xf32>
    tpu.vector_store %arg5[%c0_44, %c0_45], %99 {strides = array<i32>} : memref<16x8xf32, #tpu.memory_space<vmem>>, vector<16x8xf32>,
    return
  }
  func.func @transform_0(%arg0: i32) -> (i32, i32) {
    %c0_i32 = arith.constant 0 : i32
    %c0_i32_0 = arith.constant 0 : i32
    return %c0_i32, %arg0 : i32, i32
  }
  func.func @transform_1(%arg0: i32) -> (i32, i32) {
    %c0_i32 = arith.constant 0 : i32
    %c0_i32_0 = arith.constant 0 : i32
    return %c0_i32, %arg0 : i32, i32
  }
  func.func @transform_2(%arg0: i32) -> (i32, i32, i32) {
    %c0_i32 = arith.constant 0 : i32
    %c0_i32_0 = arith.constant 0 : i32
    %c0_i32_1 = arith.constant 0 : i32
    %c0_i32_2 = arith.constant 0 : i32
    return %c0_i32, %c0_i32_0, %c0_i32_1 : i32, i32, i32
  }
  func.func @transform_3(%arg0: i32) -> (i32, i32) {
    %c0_i32 = arith.constant 0 : i32
    %c0_i32_0 = arith.constant 0 : i32
    %c0_i32_1 = arith.constant 0 : i32
    return %c0_i32, %c0_i32_0 : i32, i32
  }
  func.func @transform_4(%arg0: i32) -> (i32, i32) {
    %c0_i32 = arith.constant 0 : i32
    %c0_i32_0 = arith.constant 0 : i32
    return %c0_i32, %arg0 : i32, i32
  }
}

</mosaic_0001>

<llo_original>
// kernel: tpu_custom_call.1
$region0: #{tpu_custom_call.1}
  #allocation0 [shape = 'u32[]', space=smem, size = 0x4, offset = 0x4, fixed_abs, tag = 'smem constant byte address 0x4 - core index']
  #allocation1 [shape = 'u32[144,128]{1,0:T(1,128)}', space=vmem, size = 0x12000, scoped, tag = 'internal scratch']
  %s0 = inlined_call_operand.vmem [shape: f32[32,8], index: 0, kind: input, shape index: {}]
  %s1 = inlined_call_operand.vmem [shape: f32[4,8], index: 1, kind: input, shape index: {}]
  %s2 = inlined_call_operand.hbm [shape: f32[3,32,32], index: 2, kind: input, shape index: {}]
  %s3 = inlined_call_operand.vmem [shape: f32[32,7], index: 3, kind: input, shape index: {}]
  %s4 = inlined_call_operand.vmem [shape: f32[16,8], index: 4, kind: output, shape index: {}]
  %s5 = sld [smem:[#allocation0]]
  $region30: #{tpu_custom_call.1} parent=0
    _
  %s7 = ssub.s32 1, %s5
  %s8 = scalar_select 0, %s7, %s5
  $region1: #{tpu_custom_call.1} parent=0
    #allocation2 [shape = 'u8[49152]{0}', space=vmem, size = 0xc000, scoped, tag = 'input window, operand 2, single buffered']
    #allocation3 [shape = 's32[1]{0}', space=sflag, size = 0x4, scoped, tag = 'scoped memory for tpu_custom_call.1']
    %9 = vsyncpa [#allocation3], 0
    // Predicated region
    $region2: #{tpu_custom_call.1} parent=1 // pred_check
      _
    $region3: #{tpu_custom_call.1} parent=1 // pred_check_branch
      %11 = sbr.rel (0) target = $region5
    $region4: #{tpu_custom_call.1} parent=1 // pred_region
      _
    $region5: #{tpu_custom_call.1} parent=1 // pred_fallthru
      _
    // Predicated region
    $region6: #{tpu_custom_call.1} parent=1 // pred_check
      _
    $region7: #{tpu_custom_call.1} parent=1 // pred_check_branch
      %13 = sbr.rel (0) target = $region9
    $region8: #{tpu_custom_call.1} parent=1 // pred_region
      _
    $region9: #{tpu_custom_call.1} parent=1 // pred_fallthru
      _
    // Predicated region
    $region10: #{tpu_custom_call.1} parent=1 // pred_check
      _
    $region11: #{tpu_custom_call.1} parent=1 // pred_check_branch
      %15 = sbr.rel (0) target = $region13
    $region12: #{tpu_custom_call.1} parent=1 // pred_region
      %s17 = ssub.s32 1536, 1536
      %18 = vsyncadd [#allocation3], %s17
      %s19 = sshll.u32 [#allocation2], 4
      %s20 = int_to_ptr.vmem [resolvable:$true] %s19
      %25 = dma.hbm_to_vmem [thread:$0]  %s2, 1536, %s20, [#allocation3], 128, 128, 8
    $region13: #{tpu_custom_call.1} parent=1 // pred_fallthru
      _
    // Predicated region
    $region14: #{tpu_custom_call.1} parent=1 // pred_check
      _
    $region15: #{tpu_custom_call.1} parent=1 // pred_check_branch
      %27 = sbr.rel (0) target = $region17
    $region16: #{tpu_custom_call.1} parent=1 // pred_region
      _
    $region17: #{tpu_custom_call.1} parent=1 // pred_fallthru
      _
    // Predicated region
    $region18: #{tpu_custom_call.1} parent=1 // pred_check
      _
    $region19: #{tpu_custom_call.1} parent=1 // pred_check_branch
      %29 = sbr.rel (0) target = $region21
    $region20: #{tpu_custom_call.1} parent=1 // pred_region
      %30 = dma.done [#allocation3], 1536
    $region21: #{tpu_custom_call.1} parent=1 // pred_fallthru
      _
    %v31 = vld [vmem:[%s0] sm:$0xff]
    %v32 = vld [vmem:[%s0 + $0x8] sm:$0xff]
    %v33 = vld [vmem:[%s0 + $0x10] sm:$0xff]
    %v34 = vld [vmem:[%s0 + $0x18] sm:$0xff]
    %v35 = vld [vmem:[#allocation2] sm:$0xff]
    %v36 = vld [vmem:[#allocation2 + $0x8] sm:$0xff]
    %v37 = vld [vmem:[#allocation2 + $0x10] sm:$0xff]
    %v38 = vld [vmem:[#allocation2 + $0x18] sm:$0xff]
    %v39 = vld [vmem:[%s3] sm:$0xff]
    %v40 = vld [vmem:[%s3 + $0x8] sm:$0xff]
    %v41 = vld [vmem:[%s3 + $0x10] sm:$0xff]
    %v42 = vld [vmem:[%s3 + $0x18] sm:$0xff]
    %44 = vset.pattern.permute.xlu0 0
    %45 = vperm.xlu0 %44, %v39
    %v46 = vpop.permute.xlu0 %45
    %49 = vset.pattern.permute.xlu0 0
    %50 = vperm.xlu0 %49, %v40
    %v51 = vpop.permute.xlu0 %50
    %54 = vset.pattern.permute.xlu0 0
    %55 = vperm.xlu0 %54, %v41
    %v56 = vpop.permute.xlu0 %55
    %59 = vset.pattern.permute.xlu0 0
    %60 = vperm.xlu0 %59, %v42
    %v61 = vpop.permute.xlu0 %60
    %vm63 = vcmask 261120
    %v65 = vsel %vm63, %v35, 0
    %v68 = vsel %vm63, %v36, 0
    %v71 = vsel %vm63, %v37, 0
    %v74 = vsel %vm63, %v38, 0
    %76 = vmatprep.subr.mxu0 0.0
    %77 = vmatpush1.msra.mxu0 %v31
    %78 = vmatprep.subr.mxu0 0.0
    %79 = vmatpush1.msra.mxu0 %v32
    %80 = vmatprep.subr.mxu0 0.0
    %81 = vmatpush1.msra.mxu0 %v33
    %82 = vmatprep.subr.mxu0 0.0
    %83 = vmatpush1.msra.mxu0 %v34
    %84 = vmatprep.subr.mxu0 0.0
    %85 = vmatpush1.msra.mxu0 0.0
    %86 = vmatprep.subr.mxu0 0.0
    %87 = vmatpush1.msra.mxu0 0.0
    %88 = vmatprep.subr.mxu0 0.0
    %89 = vmatpush1.msra.mxu0 0.0
    %90 = vmatprep.subr.mxu0 0.0
    %91 = vmatpush1.msra.mxu0 0.0
    %92 = vmatprep.subr.mxu0 0.0
    %93 = vmatpush1.msra.mxu0 0.0
    %94 = vmatprep.subr.mxu0 0.0
    %95 = vmatpush1.msra.mxu0 0.0
    %96 = vmatprep.subr.mxu0 0.0
    %97 = vmatpush1.msra.mxu0 0.0
    %98 = vmatprep.subr.mxu0 0.0
    %99 = vmatpush1.msra.mxu0 0.0
    %100 = vmatprep.subr.mxu0 0.0
    %101 = vmatpush1.msra.mxu0 0.0
    %102 = vmatprep.subr.mxu0 0.0
    %103 = vmatpush1.msra.mxu0 0.0
    %104 = vmatprep.subr.mxu0 0.0
    %105 = vmatpush1.msra.mxu0 0.0
    %106 = vmatprep.subr.mxu0 0.0
    %107 = vmatpush1.msra.mxu0 0.0
    %108 = vmatprep.subr.mxu0 0.0
    %109 = vmatpush1.msra.mxu0 0.0
    %110 = vmatprep.subr.mxu0 0.0
    %111 = vmatpush1.msra.mxu0 0.0
    %112 = vmatprep.subr.mxu0 0.0
    %113 = vmatpush1.msra.mxu0 0.0
    %114 = vmatprep.subr.mxu0 0.0
    %115 = vmatpush1.msra.mxu0 0.0
    %116 = vmatprep.subr.mxu0 0.0
    %117 = vmatpush1.msra.mxu0 0.0
    %118 = vmatprep.subr.mxu0 0.0
    %119 = vmatpush1.msra.mxu0 0.0
    %120 = vmatprep.subr.mxu0 0.0
    %121 = vmatpush1.msra.mxu0 0.0
    %122 = vmatprep.subr.mxu0 0.0
    %123 = vmatpush1.msra.mxu0 0.0
    %124 = vmatprep.subr.mxu0 0.0
    %125 = vmatpush1.msra.mxu0 0.0
    %126 = vmatprep.subr.mxu0 0.0
    %127 = vmatpush1.msra.mxu0 0.0
    %128 = vmatprep.subr.mxu0 0.0
    %129 = vmatpush1.msra.mxu0 0.0
    %130 = vmatprep.subr.mxu0 0.0
    %131 = vmatpush1.msra.mxu0 0.0
    %132 = vmatprep.subr.mxu0 0.0
    %133 = vmatpush1.msra.mxu0 0.0
    %134 = vmatprep.subr.mxu0 0.0
    %135 = vmatpush1.msra.mxu0 0.0
    %136 = vmatprep.subr.mxu0 0.0
    %137 = vmatpush1.msra.mxu0 0.0
    %138 = vmatprep.subr.mxu0 0.0
    %139 = vmatpush1.msra.mxu0 0.0
    %140 = vmatprep.mubr.f32.mxu0 0.0
    %141 = vmatmul.mubr.f32.gmra.mrb[0].mxu0 %v65
    %v142 = vpop.f32.mrb[0].mxu0
    %v143 = vadd.f32 %v46, %v142
    %v144 = vpop.f32.mrb[0].mxu0
    %145 = vmatprep.mubr.f32.mxu0 0.0
    %146 = vmatmul.mubr.f32.gmra.mrb[0].mxu0 %v68
    %v147 = vpop.f32.mrb[0].mxu0
    %v148 = vadd.f32 %v51, %v147
    %v149 = vpop.f32.mrb[0].mxu0
    %150 = vmatprep.mubr.f32.mxu0 0.0
    %151 = vmatmul.mubr.f32.gmra.mrb[0].mxu0 %v71
    %v152 = vpop.f32.mrb[0].mxu0
    %v153 = vadd.f32 %v56, %v152
    %v154 = vpop.f32.mrb[0].mxu0
    %155 = vmatprep.mubr.f32.mxu0 0.0
    %156 = vmatmul.mubr.f32.gmra.mrb[0].mxu0 %v74
    %v157 = vpop.f32.mrb[0].mxu0
    %v158 = vadd.f32 %v61, %v157
    %v159 = vpop.f32.mrb[0].mxu0
    %160 = vdwg.mxu0
    %vm161 = vcmask 64512
    %v162 = vsel %vm161, %v143, 0.0
    %v163 = vsel %vm161, %v148, 0.0
    %v164 = vadd.f32 %v162, %v163
    %v165 = vsel %vm161, %v153, 0.0
    %v166 = vadd.f32 %v164, %v165
    %v167 = vsel %vm161, %v158, 0.0
    %v168 = vadd.f32 %v166, %v167
    %v169 = vrot.slane %v168, 4
    %v170 = vadd.f32 %v168, %v169
    %v171 = vrot.slane %v170, 2
    %v172 = vadd.f32 %v170, %v171
    %v173 = vrot.slane %v172, 1
    %v174 = vadd.f32 %v172, %v173
    %v175 = vrcp.pop 32.0
    %v176 = vmul.f32 %v174, %v175
    %v177 = vsub.f32 %v143, %v176
    %v178 = vsub.f32 %v148, %v176
    %v179 = vsub.f32 %v153, %v176
    %v180 = vsub.f32 %v158, %v176
    %v181 = vmul.f32 %v177, %v177
    %v182 = vmul.f32 %v178, %v178
    %v183 = vmul.f32 %v179, %v179
    %v184 = vmul.f32 %v180, %v180
    %v185 = vsel %vm161, %v181, 0.0
    %v186 = vsel %vm161, %v182, 0.0
    %v187 = vadd.f32 %v185, %v186
    %v188 = vsel %vm161, %v183, 0.0
    %v189 = vadd.f32 %v187, %v188
    %v190 = vsel %vm161, %v184, 0.0
    %v191 = vadd.f32 %v189, %v190
    %v192 = vrot.slane %v191, 4
    %v193 = vadd.f32 %v191, %v192
    %v194 = vrot.slane %v193, 2
    %v195 = vadd.f32 %v193, %v194
    %v196 = vrot.slane %v195, 1
    %v197 = vadd.f32 %v195, %v196
    %v198 = vmul.f32 %v197, %v175
    %v199 = vadd.f32 %v198, 1e-05
    %v200 = vrsqrt.pop %v199
    %v201 = vmul.f32 %v177, %v200
    %v202 = vmul.f32 %v178, %v200
    %v203 = vmul.f32 %v179, %v200
    %v204 = vmul.f32 %v180, %v200
    %205 = vset.pattern.permute.xlu0 1
    %206 = vperm.xlu0 %205, %v39
    %v207 = vpop.permute.xlu0 %206
    %209 = vset.pattern.permute.xlu0 1
    %210 = vperm.xlu0 %209, %v40
    %v211 = vpop.permute.xlu0 %210
    %213 = vset.pattern.permute.xlu0 1
    %214 = vperm.xlu0 %213, %v41
    %v215 = vpop.permute.xlu0 %214
    %217 = vset.pattern.permute.xlu0 1
    %218 = vperm.xlu0 %217, %v42
    %v219 = vpop.permute.xlu0 %218
    %v221 = vmul.f32 %v201, %v207
    %v222 = vmul.f32 %v202, %v211
    %v223 = vmul.f32 %v203, %v215
    %v224 = vmul.f32 %v204, %v219
    %225 = vset.pattern.permute.xlu0 2
    %226 = vperm.xlu0 %225, %v39
    %v227 = vpop.permute.xlu0 %226
    %229 = vset.pattern.permute.xlu0 2
    %230 = vperm.xlu0 %229, %v40
    %v231 = vpop.permute.xlu0 %230
    %233 = vset.pattern.permute.xlu0 2
    %234 = vperm.xlu0 %233, %v41
    %v235 = vpop.permute.xlu0 %234
    %237 = vset.pattern.permute.xlu0 2
    %238 = vperm.xlu0 %237, %v42
    %v239 = vpop.permute.xlu0 %238
    %v241 = vadd.f32 %v221, %v227
    %v242 = vadd.f32 %v222, %v231
    %v243 = vadd.f32 %v223, %v235
    %v244 = vadd.f32 %v224, %v239
    %v245 = vxor.u32 %v241, 2147483648
    %v246 = vxor.u32 %v242, 2147483648
    %v247 = vxor.u32 %v243, 2147483648
    %v248 = vxor.u32 %v244, 2147483648
    %v249 = vmul.f32 %v245, 1.442695
    %v250 = vpow.pop %v249
    %v251 = vmul.f32 %v246, 1.442695
    %v252 = vpow.pop %v251
    %v253 = vmul.f32 %v247, 1.442695
    %v254 = vpow.pop %v253
    %v255 = vmul.f32 %v248, 1.442695
    %v256 = vpow.pop %v255
    %v257 = vadd.f32 %v250, 1.0
    %v258 = vadd.f32 %v252, 1.0
    %v259 = vadd.f32 %v254, 1.0
    %v260 = vadd.f32 %v256, 1.0
    %v261 = vrcp.pop %v257
    %v262 = vmul.f32 1.0, %v261
    %v263 = vrcp.pop %v258
    %v264 = vmul.f32 1.0, %v263
    %v265 = vrcp.pop %v259
    %v266 = vmul.f32 1.0, %v265
    %v267 = vrcp.pop %v260
    %v268 = vmul.f32 1.0, %v267
    %v269 = vmul.f32 %v241, %v262
    %v270 = vmul.f32 %v242, %v264
    %v271 = vmul.f32 %v243, %v266
    %v272 = vmul.f32 %v244, %v268
    %s273 = scalar_lea.vmem [#allocation2], 32
    %v274 = vld [vmem:[%s273] sm:$0xff]
    %v275 = vld [vmem:[%s273 + $0x8] sm:$0xff]
    %v276 = vld [vmem:[%s273 + $0x10] sm:$0xff]
    %v277 = vld [vmem:[%s273 + $0x18] sm:$0xff]
    %278 = vset.pattern.permute.xlu0 3
    %279 = vperm.xlu0 %278, %v39
    %v280 = vpop.permute.xlu0 %279
    %282 = vset.pattern.permute.xlu0 3
    %283 = vperm.xlu0 %282, %v40
    %v284 = vpop.permute.xlu0 %283
    %286 = vset.pattern.permute.xlu0 3
    %287 = vperm.xlu0 %286, %v41
    %v288 = vpop.permute.xlu0 %287
    %290 = vset.pattern.permute.xlu0 3
    %291 = vperm.xlu0 %290, %v42
    %v292 = vpop.permute.xlu0 %291
    %v295 = vsel %vm63, %v274, 0
    %v298 = vsel %vm63, %v275, 0
    %v301 = vsel %vm63, %v276, 0
    %v304 = vsel %vm63, %v277, 0
    %306 = vmatprep.subr.mxu0 0.0
    %307 = vmatpush1.msra.mxu0 %v269
    %308 = vmatprep.subr.mxu0 0.0
    %309 = vmatpush1.msra.mxu0 %v270
    %310 = vmatprep.subr.mxu0 0.0
    %311 = vmatpush1.msra.mxu0 %v271
    %312 = vmatprep.subr.mxu0 0.0
    %313 = vmatpush1.msra.mxu0 %v272
    %314 = vmatprep.subr.mxu0 0.0
    %315 = vmatpush1.msra.mxu0 0.0
    %316 = vmatprep.subr.mxu0 0.0
    %317 = vmatpush1.msra.mxu0 0.0
    %318 = vmatprep.subr.mxu0 0.0
    %319 = vmatpush1.msra.mxu0 0.0
    %320 = vmatprep.subr.mxu0 0.0
    %321 = vmatpush1.msra.mxu0 0.0
    %322 = vmatprep.subr.mxu0 0.0
    %323 = vmatpush1.msra.mxu0 0.0
    %324 = vmatprep.subr.mxu0 0.0
    %325 = vmatpush1.msra.mxu0 0.0
    %326 = vmatprep.subr.mxu0 0.0
    %327 = vmatpush1.msra.mxu0 0.0
    %328 = vmatprep.subr.mxu0 0.0
    %329 = vmatpush1.msra.mxu0 0.0
    %330 = vmatprep.subr.mxu0 0.0
    %331 = vmatpush1.msra.mxu0 0.0
    %332 = vmatprep.subr.mxu0 0.0
    %333 = vmatpush1.msra.mxu0 0.0
    %334 = vmatprep.subr.mxu0 0.0
    %335 = vmatpush1.msra.mxu0 0.0
    %336 = vmatprep.subr.mxu0 0.0
    %337 = vmatpush1.msra.mxu0 0.0
    %338 = vmatprep.subr.mxu0 0.0
    %339 = vmatpush1.msra.mxu0 0.0
    %340 = vmatprep.subr.mxu0 0.0
    %341 = vmatpush1.msra.mxu0 0.0
    %342 = vmatprep.subr.mxu0 0.0
    %343 = vmatpush1.msra.mxu0 0.0
    %344 = vmatprep.subr.mxu0 0.0
    %345 = vmatpush1.msra.mxu0 0.0
    %346 = vmatprep.subr.mxu0 0.0
    %347 = vmatpush1.msra.mxu0 0.0
    %348 = vmatprep.subr.mxu0 0.0
    %349 = vmatpush1.msra.mxu0 0.0
    %350 = vmatprep.subr.mxu0 0.0
    %351 = vmatpush1.msra.mxu0 0.0
    %352 = vmatprep.subr.mxu0 0.0
    %353 = vmatpush1.msra.mxu0 0.0
    %354 = vmatprep.subr.mxu0 0.0
    %355 = vmatpush1.msra.mxu0 0.0
    %356 = vmatprep.subr.mxu0 0.0
    %357 = vmatpush1.msra.mxu0 0.0
    %358 = vmatprep.subr.mxu0 0.0
    %359 = vmatpush1.msra.mxu0 0.0
    %360 = vmatprep.subr.mxu0 0.0
    %361 = vmatpush1.msra.mxu0 0.0
    %362 = vmatprep.subr.mxu0 0.0
    %363 = vmatpush1.msra.mxu0 0.0
    %364 = vmatprep.subr.mxu0 0.0
    %365 = vmatpush1.msra.mxu0 0.0
    %366 = vmatprep.subr.mxu0 0.0
    %367 = vmatpush1.msra.mxu0 0.0
    %368 = vmatprep.subr.mxu0 0.0
    %369 = vmatpush1.msra.mxu0 0.0
    %370 = vmatprep.mubr.f32.mxu0 0.0
    %371 = vmatmul.mubr.f32.gmra.mrb[0].mxu0 %v295
    %v372 = vpop.f32.mrb[0].mxu0
    %v373 = vadd.f32 %v280, %v372
    %v374 = vpop.f32.mrb[0].mxu0
    %375 = vmatprep.mubr.f32.mxu0 0.0
    %376 = vmatmul.mubr.f32.gmra.mrb[0].mxu0 %v298
    %v377 = vpop.f32.mrb[0].mxu0
    %v378 = vadd.f32 %v284, %v377
    %v379 = vpop.f32.mrb[0].mxu0
    %380 = vmatprep.mubr.f32.mxu0 0.0
    %381 = vmatmul.mubr.f32.gmra.mrb[0].mxu0 %v301
    %v382 = vpop.f32.mrb[0].mxu0
    %v383 = vadd.f32 %v288, %v382
    %v384 = vpop.f32.mrb[0].mxu0
    %385 = vmatprep.mubr.f32.mxu0 0.0
    %386 = vmatmul.mubr.f32.gmra.mrb[0].mxu0 %v304
    %v387 = vpop.f32.mrb[0].mxu0
    %v388 = vadd.f32 %v292, %v387
    %v389 = vpop.f32.mrb[0].mxu0
    %390 = vdwg.mxu0
    %v391 = vsel %vm161, %v373, 0.0
    %v392 = vsel %vm161, %v378, 0.0
    %v393 = vadd.f32 %v391, %v392
    %v394 = vsel %vm161, %v383, 0.0
    %v395 = vadd.f32 %v393, %v394
    %v396 = vsel %vm161, %v388, 0.0
    %v397 = vadd.f32 %v395, %v396
    %v398 = vrot.slane %v397, 4
    %v399 = vadd.f32 %v397, %v398
    %v400 = vrot.slane %v399, 2
    %v401 = vadd.f32 %v399, %v400
    %v402 = vrot.slane %v401, 1
    %v403 = vadd.f32 %v401, %v402
    %v404 = vmul.f32 %v403, %v175
    %v405 = vsub.f32 %v373, %v404
    %v406 = vsub.f32 %v378, %v404
    %v407 = vsub.f32 %v383, %v404
    %v408 = vsub.f32 %v388, %v404
    %v409 = vmul.f32 %v405, %v405
    %v410 = vmul.f32 %v406, %v406
    %v411 = vmul.f32 %v407, %v407
    %v412 = vmul.f32 %v408, %v408
    %v413 = vsel %vm161, %v409, 0.0
    %v414 = vsel %vm161, %v410, 0.0
    %v415 = vadd.f32 %v413, %v414
    %v416 = vsel %vm161, %v411, 0.0
    %v417 = vadd.f32 %v415, %v416
    %v418 = vsel %vm161, %v412, 0.0
    %v419 = vadd.f32 %v417, %v418
    %v420 = vrot.slane %v419, 4
    %v421 = vadd.f32 %v419, %v420
    %v422 = vrot.slane %v421, 2
    %v423 = vadd.f32 %v421, %v422
    %v424 = vrot.slane %v423, 1
    %v425 = vadd.f32 %v423, %v424
    %v426 = vmul.f32 %v425, %v175
    %v427 = vadd.f32 %v426, 1e-05
    %v428 = vrsqrt.pop %v427
    %v429 = vmul.f32 %v405, %v428
    %v430 = vmul.f32 %v406, %v428
    %v431 = vmul.f32 %v407, %v428
    %v432 = vmul.f32 %v408, %v428
    %433 = vset.pattern.permute.xlu0 4
    %434 = vperm.xlu0 %433, %v39
    %v435 = vpop.permute.xlu0 %434
    %437 = vset.pattern.permute.xlu0 4
    %438 = vperm.xlu0 %437, %v40
    %v439 = vpop.permute.xlu0 %438
    %441 = vset.pattern.permute.xlu0 4
    %442 = vperm.xlu0 %441, %v41
    %v443 = vpop.permute.xlu0 %442
    %445 = vset.pattern.permute.xlu0 4
    %446 = vperm.xlu0 %445, %v42
    %v447 = vpop.permute.xlu0 %446
    %v449 = vmul.f32 %v429, %v435
    %v450 = vmul.f32 %v430, %v439
    %v451 = vmul.f32 %v431, %v443
    %v452 = vmul.f32 %v432, %v447
    %453 = vset.pattern.permute.xlu0 5
    %454 = vperm.xlu0 %453, %v39
    %v455 = vpop.permute.xlu0 %454
    %457 = vset.pattern.permute.xlu0 5
    %458 = vperm.xlu0 %457, %v40
    %v459 = vpop.permute.xlu0 %458
    %461 = vset.pattern.permute.xlu0 5
    %462 = vperm.xlu0 %461, %v41
    %v463 = vpop.permute.xlu0 %462
    %465 = vset.pattern.permute.xlu0 5
    %466 = vperm.xlu0 %465, %v42
    %v467 = vpop.permute.xlu0 %466
    %v469 = vadd.f32 %v449, %v455
    %v470 = vadd.f32 %v450, %v459
    %v471 = vadd.f32 %v451, %v463
    %v472 = vadd.f32 %v452, %v467
    %v473 = vxor.u32 %v469, 2147483648
    %v474 = vxor.u32 %v470, 2147483648
    %v475 = vxor.u32 %v471, 2147483648
    %v476 = vxor.u32 %v472, 2147483648
    %v477 = vmul.f32 %v473, 1.442695
    %v478 = vpow.pop %v477
    %v479 = vmul.f32 %v474, 1.442695
    %v480 = vpow.pop %v479
    %v481 = vmul.f32 %v475, 1.442695
    %v482 = vpow.pop %v481
    %v483 = vmul.f32 %v476, 1.442695
    %v484 = vpow.pop %v483
    %v485 = vadd.f32 %v478, 1.0
    %v486 = vadd.f32 %v480, 1.0
    %v487 = vadd.f32 %v482, 1.0
    %v488 = vadd.f32 %v484, 1.0
    %v489 = vrcp.pop %v485
    %v490 = vmul.f32 1.0, %v489
    %v491 = vrcp.pop %v486
    %v492 = vmul.f32 1.0, %v491
    %v493 = vrcp.pop %v487
    %v494 = vmul.f32 1.0, %v493
    %v495 = vrcp.pop %v488
    %v496 = vmul.f32 1.0, %v495
    %v497 = vmul.f32 %v469, %v490
    %v498 = vmul.f32 %v470, %v492
    %v499 = vmul.f32 %v471, %v494
    %v500 = vmul.f32 %v472, %v496
    %s501 = scalar_lea.vmem [#allocation2], 64
    %v502 = vld [vmem:[%s501] sm:$0xf]
    %v503 = vld [vmem:[%s3] sm:$0xf]
    %505 = vset.pattern.permute.xlu0 6
    %506 = vperm.xlu0 %505, %v503
    %v507 = vpop.permute.xlu0 %506
    %v510 = vsel %vm63, %v502, 0
    %512 = vmatprep.subr.mxu0 0.0
    %513 = vmatpush1.msra.mxu0 %v497
    %514 = vmatprep.subr.mxu0 0.0
    %515 = vmatpush1.msra.mxu0 %v498
    %516 = vmatprep.subr.mxu0 0.0
    %517 = vmatpush1.msra.mxu0 %v499
    %518 = vmatprep.subr.mxu0 0.0
    %519 = vmatpush1.msra.mxu0 %v500
    %520 = vmatprep.subr.mxu0 0.0
    %521 = vmatpush1.msra.mxu0 0.0
    %522 = vmatprep.subr.mxu0 0.0
    %523 = vmatpush1.msra.mxu0 0.0
    %524 = vmatprep.subr.mxu0 0.0
    %525 = vmatpush1.msra.mxu0 0.0
    %526 = vmatprep.subr.mxu0 0.0
    %527 = vmatpush1.msra.mxu0 0.0
    %528 = vmatprep.subr.mxu0 0.0
    %529 = vmatpush1.msra.mxu0 0.0
    %530 = vmatprep.subr.mxu0 0.0
    %531 = vmatpush1.msra.mxu0 0.0
    %532 = vmatprep.subr.mxu0 0.0
    %533 = vmatpush1.msra.mxu0 0.0
    %534 = vmatprep.subr.mxu0 0.0
    %535 = vmatpush1.msra.mxu0 0.0
    %536 = vmatprep.subr.mxu0 0.0
    %537 = vmatpush1.msra.mxu0 0.0
    %538 = vmatprep.subr.mxu0 0.0
    %539 = vmatpush1.msra.mxu0 0.0
    %540 = vmatprep.subr.mxu0 0.0
    %541 = vmatpush1.msra.mxu0 0.0
    %542 = vmatprep.subr.mxu0 0.0
    %543 = vmatpush1.msra.mxu0 0.0
    %544 = vmatprep.subr.mxu0 0.0
    %545 = vmatpush1.msra.mxu0 0.0
    %546 = vmatprep.subr.mxu0 0.0
    %547 = vmatpush1.msra.mxu0 0.0
    %548 = vmatprep.subr.mxu0 0.0
    %549 = vmatpush1.msra.mxu0 0.0
    %550 = vmatprep.subr.mxu0 0.0
    %551 = vmatpush1.msra.mxu0 0.0
    %552 = vmatprep.subr.mxu0 0.0
    %553 = vmatpush1.msra.mxu0 0.0
    %554 = vmatprep.subr.mxu0 0.0
    %555 = vmatpush1.msra.mxu0 0.0
    %556 = vmatprep.subr.mxu0 0.0
    %557 = vmatpush1.msra.mxu0 0.0
    %558 = vmatprep.subr.mxu0 0.0
    %559 = vmatpush1.msra.mxu0 0.0
    %560 = vmatprep.subr.mxu0 0.0
    %561 = vmatpush1.msra.mxu0 0.0
    %562 = vmatprep.subr.mxu0 0.0
    %563 = vmatpush1.msra.mxu0 0.0
    %564 = vmatprep.subr.mxu0 0.0
    %565 = vmatpush1.msra.mxu0 0.0
    %566 = vmatprep.subr.mxu0 0.0
    %567 = vmatpush1.msra.mxu0 0.0
    %568 = vmatprep.subr.mxu0 0.0
    %569 = vmatpush1.msra.mxu0 0.0
    %570 = vmatprep.subr.mxu0 0.0
    %571 = vmatpush1.msra.mxu0 0.0
    %572 = vmatprep.subr.mxu0 0.0
    %573 = vmatpush1.msra.mxu0 0.0
    %574 = vmatprep.subr.mxu0 0.0
    %575 = vmatpush1.msra.mxu0 0.0
    %576 = vmatprep.mubr.f32.mxu0 0.0
    %577 = vmatmul.mubr.f32.gmra.mrb[0].mxu0 %v510
    %v578 = vpop.f32.mrb[0].mxu0
    %v579 = vadd.f32 %v507, %v578
    %v580 = vpop.f32.mrb[0].mxu0
    %581 = vdwg.mxu0
    %v582 = vtanh.pop %v579
    %v583 = vld [vmem:[%s1] sm:$0xf]
    %v584 = vadd.f32 %v582, %v583
    %v585 = vmax.f32 %v584, -0.999999
    %v586 = vmin.f32 %v585, 0.999999
    %v587 = vsub.f32 %v586, %v582
    %v588 = vmul.f32 %v587, -0.5
    %v589 = vmul.f32 %v588, %v587
    %v590 = vsub.f32 %v589, 0.9189385
    %vm591 = vcmask 60416
    %v592 = vsel %vm591, %v590, 0.0
    %v593 = vrot.slane %v592, 4
    %v594 = vadd.f32 %v592, %v593
    %v595 = vrot.slane %v594, 2
    %v596 = vadd.f32 %v594, %v595
    %v597 = vrot.slane %v596, 1
    %v598 = vadd.f32 %v596, %v597
    %v600 = vrot.slane %v586, 4
    %vm602 = vcmask 1043456
    %v603 = vsel %vm602, %v582, %v600
    %vm604 = vcmask 1040384
    %v605 = vsel %vm604, %v598, 0.0
    %606 = vst.msk [vmem:[%s4] sm:$0xff] %vm161, %v603
    %607 = vst.msk [vmem:[%s4 + $0x8] sm:$0xff] %vm161, %v605
    // Predicated region
    $region22: #{tpu_custom_call.1} parent=1 // pred_check
      _
    $region23: #{tpu_custom_call.1} parent=1 // pred_check_branch
      %609 = sbr.rel (0) target = $region25
    $region24: #{tpu_custom_call.1} parent=1 // pred_region
      _
    $region25: #{tpu_custom_call.1} parent=1 // pred_fallthru
      _
    // Predicated region
    $region26: #{tpu_custom_call.1} parent=1 // pred_check
      _
    $region27: #{tpu_custom_call.1} parent=1 // pred_check_branch
      %611 = sbr.rel (0) target = $region29
    $region28: #{tpu_custom_call.1} parent=1 // pred_region
      _
    $region29: #{tpu_custom_call.1} parent=1 // pred_fallthru
      _
    %612 = vsyncpa [#allocation3], 1

</llo_original>
